<compile_context>
chip_gen: v7x
topology: tpu7x:2x2x1
jax: 0.10.0
libtpu: 0.0.40
codegen_flags: <defaults>
</compile_context>

<pallas_src>
import functools

import jax
import jax.numpy as jnp
from jax.experimental import pallas as pl
from jax.experimental.pallas import tpu as pltpu

LANE = 128      # lane width (last-dim alignment target)
SUBLANE = 8     # f32 sublane width (second-to-last-dim alignment target)


def _round_up(x, m):
    return ((x + m - 1) // m) * m


def _cdiv(a, b):
    return (a + b - 1) // b


# -----------------------------------------------------------------------------
# Kernel
# -----------------------------------------------------------------------------
def qnet_kernel(x_ref, w_ref, b_ref, o_ref, *, input_dim, in_rows, p):
    """x_ref:  (TB, input_dim) f32   -- unpadded feature dim
       w_ref:  (in_rows + 2p, p) bf16 -- [W1 | W2 | W3] stacked, 16-row aligned
       b_ref:  (3*8, p) f32           -- b1/b2/b3 at rows 0 / 8 / 16
       o_ref:  (TB, p) f32            -- lane-padded output (p = 128-multiple)."""
    # Static slices into the packed weight slab (row layout fixed at build time).
    w1 = w_ref[0:input_dim, :]                      # (input_dim, p) bf16
    w2 = w_ref[in_rows:in_rows + p, :]              # (p, p) bf16
    w3 = w_ref[in_rows + p:in_rows + 2 * p, :]      # (p, p) bf16

    b1 = b_ref[0:1, :]                              # (1, p) f32
    b2 = b_ref[SUBLANE:SUBLANE + 1, :]
    b3 = b_ref[2 * SUBLANE:2 * SUBLANE + 1, :]

    x = x_ref[...].astype(jnp.bfloat16)             # bf16 MXU operand

    # Layer 1: Linear + ReLU (bf16 operands, f32 accumulate, f32 bias/ReLU)
    h1 = jnp.maximum(jnp.dot(x, w1, preferred_element_type=jnp.float32) + b1, 0.0)
    # Layer 2: Linear + ReLU
    h2 = jnp.maximum(
        jnp.dot(h1.astype(jnp.bfloat16), w2, preferred_element_type=jnp.float32) + b2, 0.0)
    # Layer 3: Linear (no activation); padded lanes remain exactly zero.
    out = jnp.dot(h2.astype(jnp.bfloat16), w3, preferred_element_type=jnp.float32) + b3
    o_ref[...] = out.astype(o_ref.dtype)


# -----------------------------------------------------------------------------
# Parameter packing (done once, outside the per-step critical path)
# -----------------------------------------------------------------------------
def pack_params(params, input_dim, hidden_dim, output_dim):
    """Zero-pad weights to lane-dense widths and stack them into a single bf16
    slab with 16-row-aligned segment offsets (bf16 sublane packing).  Biases go
    into a small f32 slab at 8-row-aligned offsets."""
    p = _round_up(max(hidden_dim, output_dim), LANE)
    in_rows = _round_up(input_dim, 2 * SUBLANE)     # 16-row align for bf16 packing

    def padw(a, rows):
        return jnp.pad(a, ((0, rows - a.shape[0]), (0, p - a.shape[1])))

    w_slab = jnp.concatenate([
        padw(params["w1t"], in_rows),               # (in_rows, p)
        padw(params["w2t"], p),                     # (p, p)
        padw(params["w3t"], p),                     # (p, p)
    ], axis=0).astype(jnp.bfloat16)

    def padb(b):
        return jnp.pad(b, ((0, SUBLANE - b.shape[0]), (0, p - b.shape[1])))

    b_slab = jnp.concatenate(
        [padb(params["b1"]), padb(params["b2"]), padb(params["b3"])],
        axis=0).astype(jnp.float32)                 # (24, p), bias in rows 0/8/16

    return w_slab, b_slab, in_rows, p


# -----------------------------------------------------------------------------
# Wrapper
# -----------------------------------------------------------------------------
def qnetwork_forward(x, w_slab, b_slab, *, input_dim, output_dim, in_rows, p,
                     tile_cap=1024, min_tiles=1):
    """x: (batch, input_dim) f32.  w_slab/b_slab: from pack_params().
    tile_cap: max rows per grid step (sweep 512/1024/2048).
    min_tiles: set >= 2 on v7x so the parallel batch axis feeds both TCs."""
    batch = x.shape[0]

    # Batch tile: big enough to amortize per-step overhead, padding bounded.
    n_tiles = max(_cdiv(batch, tile_cap),
                  min_tiles if batch >= min_tiles * SUBLANE else 1)
    tb = _round_up(_cdiv(batch, n_tiles), SUBLANE)
    n_tiles = _cdiv(batch, tb)
    batch_p = tb * n_tiles

    x = x.astype(jnp.float32)
    x_in = x if batch_p == batch else jnp.pad(x, ((0, batch_p - batch), (0, 0)))

    w_rows = w_slab.shape[0]
    b_rows = b_slab.shape[0]

    flops = 2 * batch_p * (input_dim * p + p * p + p * p)
    bytes_accessed = (x_in.size * 4 + w_slab.size * 2 + b_slab.size * 4
                      + batch_p * p * 4)

    kernel = functools.partial(qnet_kernel, input_dim=input_dim,
                               in_rows=in_rows, p=p)

    out_p = pl.pallas_call(
        kernel,
        out_shape=jax.ShapeDtypeStruct((batch_p, p), jnp.float32),
        grid=(n_tiles,),
        in_specs=[
            pl.BlockSpec((tb, input_dim), lambda i: (i, 0)),   # x streams over batch
            pl.BlockSpec((w_rows, p), lambda i: (0, 0)),       # weights stay resident
            pl.BlockSpec((b_rows, p), lambda i: (0, 0)),       # biases stay resident
        ],
        out_specs=pl.BlockSpec((tb, p), lambda i: (i, 0)),
        compiler_params=pltpu.CompilerParams(
            dimension_semantics=("parallel",)),                # megacore on v7x
        cost_estimate=pl.CostEstimate(
            flops=flops, transcendentals=0, bytes_accessed=bytes_accessed),
    )(x_in, w_slab, b_slab)

    # Strip batch + lane padding outside the kernel.
    # TODO(synk): in an RL loop, return the padded (batch_p, p) buffer and let
    # the fused consumer (argmax / TD target) index columns to avoid this copy.
    return out_p[:batch, :output_dim]


# -----------------------------------------------------------------------------
# Init + pure-JAX reference
# -----------------------------------------------------------------------------
def init_params(key, input_dim, output_dim, hidden_dim=64):
    """Mimics PyTorch nn.Linear default init (uniform +/- 1/sqrt(fan_in)).
    Weights stored pre-transposed as (in_features, out_features)."""
    ks = jax.random.split(key, 6)

    def linear(kw, kb, fan_in, fan_out):
        bound = 1.0 / jnp.sqrt(float(fan_in))
        w_t = jax.random.uniform(kw, (fan_in, fan_out), jnp.float32, -bound, bound)
        b = jax.random.uniform(kb, (1, fan_out), jnp.float32, -bound, bound)
        return w_t, b

    w1t, b1 = linear(ks[0], ks[1], input_dim, hidden_dim)
    w2t, b2 = linear(ks[2], ks[3], hidden_dim, hidden_dim)
    w3t, b3 = linear(ks[4], ks[5], hidden_dim, output_dim)
    return {"w1t": w1t, "b1": b1, "w2t": w2t, "b2": b2, "w3t": w3t, "b3": b3}


def qnetwork_ref(x, params):
    h1 = jnp.maximum(x @ params["w1t"] + params["b1"], 0.0)
    h2 = jnp.maximum(h1 @ params["w2t"] + params["b2"], 0.0)
    return h2 @ params["w3t"] + params["b3"]


if __name__ == "__main__":
    key = jax.random.PRNGKey(0)
    k_x, k_p = jax.random.split(key)

    batch, input_dim, output_dim, hidden_dim = 8, 16, 4, 64
    x = jax.random.normal(k_x, (batch, input_dim), jnp.float32)
    params = init_params(k_p, input_dim, output_dim, hidden_dim)

    # Pack once (these slabs are reused across every forward call).
    w_slab, b_slab, in_rows, p = pack_params(params, input_dim, hidden_dim, output_dim)

    out = qnetwork_forward(x, w_slab, b_slab, input_dim=input_dim,
                           output_dim=output_dim, in_rows=in_rows, p=p)
    out = jax.block_until_ready(out)

    ref = qnetwork_ref(x, params)
    assert out.shape == (batch, output_dim)
    # bf16 MXU operands (f32 accumulation) -> relaxed tolerance vs f32 reference.
    assert jnp.allclose(out, ref, atol=2e-2, rtol=2e-2), "mismatch vs reference"

    print("KERNEL_OK")
</pallas_src>

<mosaic_0001>
module attributes {stable_mosaic.version = 11 : i64} {
  func.func @qnet_kernel(%arg0: i32, %arg1: memref<8x16xf32, #tpu.memory_space<vmem>>, %arg2: memref<272x128xbf16, #tpu.memory_space<vmem>>, %arg3: memref<24x128xf32, #tpu.memory_space<vmem>>, %arg4: memref<8x128xf32, #tpu.memory_space<vmem>>) attributes {dimension_semantics = [#tpu.dimension_semantics<parallel>], iteration_bounds = array<i64: 1>, scalar_prefetch = 0 : i64, scratch_operands = 0 : i64, tpu.core_type = #tpu.core_type<tc>, window_params = [{transform_indices = @transform_0, window_bounds = array<i64: 8, 16>}, {pipeline_mode = #tpu.pipeline_mode<synchronous>, transform_indices = @transform_1, window_bounds = array<i64: 272, 128>}, {pipeline_mode = #tpu.pipeline_mode<synchronous>, transform_indices = @transform_2, window_bounds = array<i64: 24, 128>}, {transform_indices = @transform_3, window_bounds = array<i64: 8, 128>}]} {
    %c0 = arith.constant 0 : index
    %c0_0 = arith.constant 0 : index
    %0 = vector.load %arg2[%c0, %c0_0] : memref<272x128xbf16, #tpu.memory_space<vmem>>, vector<16x128xbf16>
    %c16 = arith.constant 16 : index
    %c0_1 = arith.constant 0 : index
    %1 = vector.load %arg2[%c16, %c0_1] : memref<272x128xbf16, #tpu.memory_space<vmem>>, vector<128x128xbf16>
    %c144 = arith.constant 144 : index
    %c0_2 = arith.constant 0 : index
    %2 = vector.load %arg2[%c144, %c0_2] : memref<272x128xbf16, #tpu.memory_space<vmem>>, vector<128x128xbf16>
    %c0_3 = arith.constant 0 : index
    %c0_4 = arith.constant 0 : index
    %3 = vector.load %arg3[%c0_3, %c0_4] : memref<24x128xf32, #tpu.memory_space<vmem>>, vector<1x128xf32>
    %c8 = arith.constant 8 : index
    %c0_5 = arith.constant 0 : index
    %4 = vector.load %arg3[%c8, %c0_5] : memref<24x128xf32, #tpu.memory_space<vmem>>, vector<1x128xf32>
    %c16_6 = arith.constant 16 : index
    %c0_7 = arith.constant 0 : index
    %5 = vector.load %arg3[%c16_6, %c0_7] : memref<24x128xf32, #tpu.memory_space<vmem>>, vector<1x128xf32>
    %c0_8 = arith.constant 0 : index
    %c0_9 = arith.constant 0 : index
    %6 = vector.load %arg1[%c0_8, %c0_9] : memref<8x16xf32, #tpu.memory_space<vmem>>, vector<8x16xf32>
    %7 = arith.truncf %6 : vector<8x16xf32> to vector<8x16xbf16>
    %cst = arith.constant dense<0.000000e+00> : vector<8x128xf32>
    %8 = tpu.matmul %7, %0, %cst {dimension_numbers = #tpu.dot_dimension_numbers<[1], [0], [0], [1], [0, 0, 1, 1], [], []>} : vector<8x16xbf16>, vector<16x128xbf16>, vector<8x128xf32> -> vector<8x128xf32>
    %9 = vector.broadcast %3 : vector<1x128xf32> to vector<8x128xf32>
    %10 = arith.addf %8, %9 : vector<8x128xf32>
    %cst_10 = arith.constant 0.000000e+00 : f32
    %11 = vector.broadcast %cst_10 : f32 to vector<8x128xf32>
    %12 = arith.maximumf %10, %11 : vector<8x128xf32>
    %13 = arith.truncf %12 : vector<8x128xf32> to vector<8x128xbf16>
    %cst_11 = arith.constant dense<0.000000e+00> : vector<8x128xf32>
    %14 = tpu.matmul %13, %1, %cst_11 {dimension_numbers = #tpu.dot_dimension_numbers<[1], [0], [0], [1], [0, 0, 1, 1], [], []>} : vector<8x128xbf16>, vector<128x128xbf16>, vector<8x128xf32> -> vector<8x128xf32>
    %15 = vector.broadcast %4 : vector<1x128xf32> to vector<8x128xf32>
    %16 = arith.addf %14, %15 : vector<8x128xf32>
    %cst_12 = arith.constant 0.000000e+00 : f32
    %17 = vector.broadcast %cst_12 : f32 to vector<8x128xf32>
    %18 = arith.maximumf %16, %17 : vector<8x128xf32>
    %19 = arith.truncf %18 : vector<8x128xf32> to vector<8x128xbf16>
    %cst_13 = arith.constant dense<0.000000e+00> : vector<8x128xf32>
    %20 = tpu.matmul %19, %2, %cst_13 {dimension_numbers = #tpu.dot_dimension_numbers<[1], [0], [0], [1], [0, 0, 1, 1], [], []>} : vector<8x128xbf16>, vector<128x128xbf16>, vector<8x128xf32> -> vector<8x128xf32>
    %21 = vector.broadcast %5 : vector<1x128xf32> to vector<8x128xf32>
    %22 = arith.addf %20, %21 : vector<8x128xf32>
    %c0_14 = arith.constant 0 : index
    %c0_15 = arith.constant 0 : index
    %23 = vector.load %arg4[%c0_14, %c0_15] : memref<8x128xf32, #tpu.memory_space<vmem>>, vector<8x128xf32>
    tpu.vector_store %arg4[%c0_14, %c0_15], %22 {strides = array<i32>} : memref<8x128xf32, #tpu.memory_space<vmem>>, vector<8x128xf32>,
    return
  }
  func.func @transform_0(%arg0: i32) -> (i32, i32) {
    %c0_i32 = arith.constant 0 : i32
    %c0_i32_0 = arith.constant 0 : i32
    return %arg0, %c0_i32 : i32, i32
  }
  func.func @transform_1(%arg0: i32) -> (i32, i32) {
    %c0_i32 = arith.constant 0 : i32
    %c0_i32_0 = arith.constant 0 : i32
    %c0_i32_1 = arith.constant 0 : i32
    return %c0_i32, %c0_i32_0 : i32, i32
  }
  func.func @transform_2(%arg0: i32) -> (i32, i32) {
    %c0_i32 = arith.constant 0 : i32
    %c0_i32_0 = arith.constant 0 : i32
    %c0_i32_1 = arith.constant 0 : i32
    return %c0_i32, %c0_i32_0 : i32, i32
  }
  func.func @transform_3(%arg0: i32) -> (i32, i32) {
    %c0_i32 = arith.constant 0 : i32
    %c0_i32_0 = arith.constant 0 : i32
    return %arg0, %c0_i32 : i32, i32
  }
}

</mosaic_0001>

<llo_original>
// kernel: tpu_custom_call.1
$region0: #{tpu_custom_call.1}
  #allocation0 [shape = 'u32[]', space=smem, size = 0x4, offset = 0x4, fixed_abs, tag = 'smem constant byte address 0x4 - core index']
  #allocation1 [shape = 'u32[144,128]{1,0:T(1,128)}', space=vmem, size = 0x12000, scoped, tag = 'internal scratch']
  %s0 = inlined_call_operand.hbm [shape: f32[8,16], index: 0, kind: input, shape index: {}]
  %s1 = inlined_call_operand.hbm [shape: bf16[272,128], index: 1, kind: input, shape index: {}]
  %s2 = inlined_call_operand.hbm [shape: f32[24,128], index: 2, kind: input, shape index: {}]
  %s3 = inlined_call_operand.hbm [shape: f32[8,128], index: 3, kind: output, shape index: {}]
  %s4 = sld [smem:[#allocation0]]
  $region34: #{tpu_custom_call.1} parent=0
    _
  %s6 = ssub.s32 1, %s4
  %s7 = scalar_select 0, %s6, %s4
  $region1: #{tpu_custom_call.1} parent=0
    #allocation2 [shape = 'u8[4096]{0}', space=vmem, size = 0x1000, scoped, tag = 'input window, operand 0, single buffered']
    #allocation3 [shape = 's32[1]{0}', space=sflag, size = 0x4, scoped, tag = 'scoped memory for tpu_custom_call.1']
    #allocation4 [shape = 's32[1]{0}', space=sflag, size = 0x4, scoped, tag = 'scoped memory for tpu_custom_call.1']
    #allocation5 [shape = 'u8[69632]{0}', space=vmem, size = 0x11000, scoped, tag = 'input window, operand 1, single buffered']
    #allocation6 [shape = 's32[1]{0}', space=sflag, size = 0x4, scoped, tag = 'scoped memory for tpu_custom_call.1']
    #allocation7 [shape = 'u8[12288]{0}', space=vmem, size = 0x3000, scoped, tag = 'input window, operand 2, single buffered']
    #allocation8 [shape = 'u8[4096]{0}', space=vmem, size = 0x1000, scoped, tag = 'output window, operand 0, single buffered']
    %8 = vsyncpa [#allocation3], 0
    %9 = vsyncpa [#allocation6], 0
    %10 = vsyncpa [#allocation4], 0
    // Predicated region
    $region2: #{tpu_custom_call.1} parent=1 // pred_check
      _
    $region3: #{tpu_custom_call.1} parent=1 // pred_check_branch
      %12 = sbr.rel (0) target = $region5
    $region4: #{tpu_custom_call.1} parent=1 // pred_region
      %s14 = ssub.s32 128, 128
      %15 = vsyncadd [#allocation3], %s14
      %s17 = sshll.u32 [#allocation2], 4
      %s18 = int_to_ptr.vmem [resolvable:$true] %s17
      %20 = dma.hbm_to_vmem [thread:$0]  %s0, 128, %s18, [#allocation3]
    $region5: #{tpu_custom_call.1} parent=1 // pred_fallthru
      _
    // Predicated region
    $region6: #{tpu_custom_call.1} parent=1 // pred_check
      _
    $region7: #{tpu_custom_call.1} parent=1 // pred_check_branch
      %22 = sbr.rel (0) target = $region9
    $region8: #{tpu_custom_call.1} parent=1 // pred_region
      %s24 = ssub.s32 2176, 2176
      %25 = vsyncadd [#allocation6], %s24
      %s26 = sshll.u32 [#allocation5], 4
      %s27 = int_to_ptr.vmem [resolvable:$true] %s26
      %32 = dma.hbm_to_vmem [thread:$0]  %s1, 2176, %s27, [#allocation6], 64, 64, 4
    $region9: #{tpu_custom_call.1} parent=1 // pred_fallthru
      _
    // Predicated region
    $region10: #{tpu_custom_call.1} parent=1 // pred_check
      _
    $region11: #{tpu_custom_call.1} parent=1 // pred_check_branch
      %34 = sbr.rel (0) target = $region13
    $region12: #{tpu_custom_call.1} parent=1 // pred_region
      %s36 = ssub.s32 384, 384
      %37 = vsyncadd [#allocation6], %s36
      %s38 = sshll.u32 [#allocation7], 4
      %s39 = int_to_ptr.vmem [resolvable:$true] %s38
      %44 = dma.hbm_to_vmem [thread:$0]  %s2, 384, %s39, [#allocation6], 128, 128, 8
    $region13: #{tpu_custom_call.1} parent=1 // pred_fallthru
      _
    // Predicated region
    $region14: #{tpu_custom_call.1} parent=1 // pred_check
      _
    $region15: #{tpu_custom_call.1} parent=1 // pred_check_branch
      %46 = sbr.rel (0) target = $region17
    $region16: #{tpu_custom_call.1} parent=1 // pred_region
      %47 = dma.done [#allocation3], 128
    $region17: #{tpu_custom_call.1} parent=1 // pred_fallthru
      _
    // Predicated region
    $region18: #{tpu_custom_call.1} parent=1 // pred_check
      _
    $region19: #{tpu_custom_call.1} parent=1 // pred_check_branch
      %49 = sbr.rel (0) target = $region21
    $region20: #{tpu_custom_call.1} parent=1 // pred_region
      %50 = dma.done [#allocation6], 2176
    $region21: #{tpu_custom_call.1} parent=1 // pred_fallthru
      _
    // Predicated region
    $region22: #{tpu_custom_call.1} parent=1 // pred_check
      _
    $region23: #{tpu_custom_call.1} parent=1 // pred_check_branch
      %52 = sbr.rel (0) target = $region25
    $region24: #{tpu_custom_call.1} parent=1 // pred_region
      %53 = dma.done [#allocation6], 384
    $region25: #{tpu_custom_call.1} parent=1 // pred_fallthru
      _
    %v55 = vld [vmem:[#allocation5] sm:$0xf]
    %v56 = vld [vmem:[#allocation5 + $0x4] sm:$0xf]
    %v57 = vld [vmem:[#allocation5 + $0x8] sm:$0xf]
    %v58 = vld [vmem:[#allocation5 + $0xc] sm:$0xf]
    %v59 = vld [vmem:[#allocation5 + $0x10] sm:$0xf]
    %v60 = vld [vmem:[#allocation5 + $0x14] sm:$0xf]
    %v61 = vld [vmem:[#allocation5 + $0x18] sm:$0xf]
    %v62 = vld [vmem:[#allocation5 + $0x1c] sm:$0xf]
    %v63 = vld [vmem:[#allocation5 + $0x20] sm:$0xf]
    %v64 = vld [vmem:[#allocation5 + $0x24] sm:$0xf]
    %v65 = vld [vmem:[#allocation5 + $0x28] sm:$0xf]
    %v66 = vld [vmem:[#allocation5 + $0x2c] sm:$0xf]
    %v67 = vld [vmem:[#allocation5 + $0x30] sm:$0xf]
    %v68 = vld [vmem:[#allocation5 + $0x34] sm:$0xf]
    %v69 = vld [vmem:[#allocation5 + $0x38] sm:$0xf]
    %v70 = vld [vmem:[#allocation5 + $0x3c] sm:$0xf]
    %v71 = vld [vmem:[#allocation5 + $0x40] sm:$0xf]
    %v72 = vld [vmem:[#allocation5 + $0x44] sm:$0xf]
    %v73 = vld [vmem:[#allocation5 + $0x48] sm:$0xf]
    %v74 = vld [vmem:[#allocation5 + $0x4c] sm:$0xf]
    %v75 = vld [vmem:[#allocation5 + $0x50] sm:$0xf]
    %v76 = vld [vmem:[#allocation5 + $0x54] sm:$0xf]
    %v77 = vld [vmem:[#allocation5 + $0x58] sm:$0xf]
    %v78 = vld [vmem:[#allocation5 + $0x5c] sm:$0xf]
    %v79 = vld [vmem:[#allocation5 + $0x60] sm:$0xf]
    %v80 = vld [vmem:[#allocation5 + $0x64] sm:$0xf]
    %v81 = vld [vmem:[#allocation5 + $0x68] sm:$0xf]
    %v82 = vld [vmem:[#allocation5 + $0x6c] sm:$0xf]
    %v83 = vld [vmem:[#allocation5 + $0x70] sm:$0xf]
    %v84 = vld [vmem:[#allocation5 + $0x74] sm:$0xf]
    %v85 = vld [vmem:[#allocation5 + $0x78] sm:$0xf]
    %v86 = vld [vmem:[#allocation5 + $0x7c] sm:$0xf]
    %v87 = vld [vmem:[#allocation5 + $0x80] sm:$0xf]
    %v88 = vld [vmem:[#allocation5 + $0x84] sm:$0xf]
    %v89 = vld [vmem:[#allocation7] sm:$0x1]
    %v90 = vld [vmem:[#allocation7 + $0x8] sm:$0x1]
    %v91 = vld [vmem:[#allocation7 + $0x10] sm:$0x1]
    %v92 = vld [vmem:[#allocation2] sm:$0xff]
    %v93 = vpack.c.bf16 %v92, %v92
    %v94 = vlaneseq
    %v95 = vshrl.u32 %v94, 7
    %v96 = vsub.s32 0, %v95
    %v97 = vrot.slane %v89, %v96
    %v100 = vunpack.c.l.b16 %v55
    %v101 = vunpack.c.l.b16 %v56
    %v102 = vpack.c.b16 %v101, %v100
    %vm104 = vcmask 130048
    %v106 = vsel %vm104, %v93, 0
    %108 = vmatprep.subr.bf16.mxu0 0
    %109 = vmatpush1.bf16.msra.mxu0 %v102
    %110 = vmatprep.subr.bf16.mxu0 0
    %111 = vmatpush1.bf16.msra.mxu0 0
    %112 = vmatprep.subr.bf16.mxu0 0
    %113 = vmatpush1.bf16.msra.mxu0 0
    %114 = vmatprep.subr.bf16.mxu0 0
    %115 = vmatpush1.bf16.msra.mxu0 0
    %116 = vmatprep.subr.bf16.mxu0 0
    %117 = vmatpush1.bf16.msra.mxu0 0
    %118 = vmatprep.subr.bf16.mxu0 0
    %119 = vmatpush1.bf16.msra.mxu0 0
    %120 = vmatprep.subr.bf16.mxu0 0
    %121 = vmatpush1.bf16.msra.mxu0 0
    %122 = vmatprep.subr.bf16.mxu0 0
    %123 = vmatpush1.bf16.msra.mxu0 0
    %124 = vmatprep.subr.bf16.mxu0 0
    %125 = vmatpush1.bf16.msra.mxu0 0
    %126 = vmatprep.subr.bf16.mxu0 0
    %127 = vmatpush1.bf16.msra.mxu0 0
    %128 = vmatprep.subr.bf16.mxu0 0
    %129 = vmatpush1.bf16.msra.mxu0 0
    %130 = vmatprep.subr.bf16.mxu0 0
    %131 = vmatpush1.bf16.msra.mxu0 0
    %132 = vmatprep.subr.bf16.mxu0 0
    %133 = vmatpush1.bf16.msra.mxu0 0
    %134 = vmatprep.subr.bf16.mxu0 0
    %135 = vmatpush1.bf16.msra.mxu0 0
    %136 = vmatprep.subr.bf16.mxu0 0
    %137 = vmatpush1.bf16.msra.mxu0 0
    %138 = vmatprep.subr.bf16.mxu0 0
    %139 = vmatpush1.bf16.msra.mxu0 0
    %140 = vmatprep.mubr.bf16.mxu0 0
    %141 = vmatmul.mubr.bf16.gmra.mrb[0].mxu0 %v106
    %v142 = vpop.f32.mrb[0].mxu0
    %v143 = vadd.f32 %v97, %v142
    %v144 = vpop.f32.mrb[0].mxu0
    %v145 = vpop.f32.mrb[0].mxu0
    %v146 = vpop.f32.mrb[0].mxu0
    %147 = vdwg.mxu0
    %v148 = vmax.f32 %v143, 0.0
    %v149 = vpack.c.bf16 %v148, %v148
    %v150 = vlaneseq
    %v151 = vshrl.u32 %v150, 7
    %v152 = vsub.s32 0, %v151
    %v153 = vrot.slane %v90, %v152
    %v170 = vunpack.c.l.b16 %v57
    %v171 = vunpack.c.l.b16 %v58
    %v172 = vunpack.c.l.b16 %v59
    %v173 = vunpack.c.l.b16 %v60
    %v174 = vunpack.c.l.b16 %v61
    %v175 = vunpack.c.l.b16 %v62
    %v176 = vunpack.c.l.b16 %v63
    %v177 = vunpack.c.l.b16 %v64
    %v178 = vunpack.c.l.b16 %v65
    %v179 = vunpack.c.l.b16 %v66
    %v180 = vunpack.c.l.b16 %v67
    %v181 = vunpack.c.l.b16 %v68
    %v182 = vunpack.c.l.b16 %v69
    %v183 = vunpack.c.l.b16 %v70
    %v184 = vunpack.c.l.b16 %v71
    %v185 = vunpack.c.l.b16 %v72
    %v186 = vpack.c.b16 %v171, %v170
    %v187 = vpack.c.b16 %v173, %v172
    %v188 = vpack.c.b16 %v175, %v174
    %v189 = vpack.c.b16 %v177, %v176
    %v190 = vpack.c.b16 %v179, %v178
    %v191 = vpack.c.b16 %v181, %v180
    %v192 = vpack.c.b16 %v183, %v182
    %v193 = vpack.c.b16 %v185, %v184
    %202 = vmatprep.subr.bf16.mxu0 0
    %203 = vmatpush1.bf16.msra.mxu0 %v186
    %204 = vmatprep.subr.bf16.mxu0 0
    %205 = vmatpush1.bf16.msra.mxu0 %v187
    %206 = vmatprep.subr.bf16.mxu0 0
    %207 = vmatpush1.bf16.msra.mxu0 %v188
    %208 = vmatprep.subr.bf16.mxu0 0
    %209 = vmatpush1.bf16.msra.mxu0 %v189
    %210 = vmatprep.subr.bf16.mxu0 0
    %211 = vmatpush1.bf16.msra.mxu0 %v190
    %212 = vmatprep.subr.bf16.mxu0 0
    %213 = vmatpush1.bf16.msra.mxu0 %v191
    %214 = vmatprep.subr.bf16.mxu0 0
    %215 = vmatpush1.bf16.msra.mxu0 %v192
    %216 = vmatprep.subr.bf16.mxu0 0
    %217 = vmatpush1.bf16.msra.mxu0 %v193
    %218 = vmatprep.subr.bf16.mxu0 0
    %219 = vmatpush1.bf16.msra.mxu0 0
    %220 = vmatprep.subr.bf16.mxu0 0
    %221 = vmatpush1.bf16.msra.mxu0 0
    %222 = vmatprep.subr.bf16.mxu0 0
    %223 = vmatpush1.bf16.msra.mxu0 0
    %224 = vmatprep.subr.bf16.mxu0 0
    %225 = vmatpush1.bf16.msra.mxu0 0
    %226 = vmatprep.subr.bf16.mxu0 0
    %227 = vmatpush1.bf16.msra.mxu0 0
    %228 = vmatprep.subr.bf16.mxu0 0
    %229 = vmatpush1.bf16.msra.mxu0 0
    %230 = vmatprep.subr.bf16.mxu0 0
    %231 = vmatpush1.bf16.msra.mxu0 0
    %232 = vmatprep.subr.bf16.mxu0 0
    %233 = vmatpush1.bf16.msra.mxu0 0
    %234 = vmatprep.mubr.bf16.mxu0 0
    %235 = vmatmul.mubr.bf16.gmra.mrb[0].mxu0 %v149
    %v236 = vpop.f32.mrb[0].mxu0
    %v237 = vadd.f32 %v153, %v236
    %v238 = vpop.f32.mrb[0].mxu0
    %v239 = vpop.f32.mrb[0].mxu0
    %v240 = vpop.f32.mrb[0].mxu0
    %241 = vdwg.mxu0
    %v242 = vmax.f32 %v237, 0.0
    %v243 = vpack.c.bf16 %v242, %v242
    %v244 = vlaneseq
    %v245 = vshrl.u32 %v244, 7
    %v246 = vsub.s32 0, %v245
    %v247 = vrot.slane %v91, %v246
    %v264 = vunpack.c.l.b16 %v73
    %v265 = vunpack.c.l.b16 %v74
    %v266 = vunpack.c.l.b16 %v75
    %v267 = vunpack.c.l.b16 %v76
    %v268 = vunpack.c.l.b16 %v77
    %v269 = vunpack.c.l.b16 %v78
    %v270 = vunpack.c.l.b16 %v79
    %v271 = vunpack.c.l.b16 %v80
    %v272 = vunpack.c.l.b16 %v81
    %v273 = vunpack.c.l.b16 %v82
    %v274 = vunpack.c.l.b16 %v83
    %v275 = vunpack.c.l.b16 %v84
    %v276 = vunpack.c.l.b16 %v85
    %v277 = vunpack.c.l.b16 %v86
    %v278 = vunpack.c.l.b16 %v87
    %v279 = vunpack.c.l.b16 %v88
    %v280 = vpack.c.b16 %v265, %v264
    %v281 = vpack.c.b16 %v267, %v266
    %v282 = vpack.c.b16 %v269, %v268
    %v283 = vpack.c.b16 %v271, %v270
    %v284 = vpack.c.b16 %v273, %v272
    %v285 = vpack.c.b16 %v275, %v274
    %v286 = vpack.c.b16 %v277, %v276
    %v287 = vpack.c.b16 %v279, %v278
    %296 = vmatprep.subr.bf16.mxu0 0
    %297 = vmatpush1.bf16.msra.mxu0 %v280
    %298 = vmatprep.subr.bf16.mxu0 0
    %299 = vmatpush1.bf16.msra.mxu0 %v281
    %300 = vmatprep.subr.bf16.mxu0 0
    %301 = vmatpush1.bf16.msra.mxu0 %v282
    %302 = vmatprep.subr.bf16.mxu0 0
    %303 = vmatpush1.bf16.msra.mxu0 %v283
    %304 = vmatprep.subr.bf16.mxu0 0
    %305 = vmatpush1.bf16.msra.mxu0 %v284
    %306 = vmatprep.subr.bf16.mxu0 0
    %307 = vmatpush1.bf16.msra.mxu0 %v285
    %308 = vmatprep.subr.bf16.mxu0 0
    %309 = vmatpush1.bf16.msra.mxu0 %v286
    %310 = vmatprep.subr.bf16.mxu0 0
    %311 = vmatpush1.bf16.msra.mxu0 %v287
    %312 = vmatprep.subr.bf16.mxu0 0
    %313 = vmatpush1.bf16.msra.mxu0 0
    %314 = vmatprep.subr.bf16.mxu0 0
    %315 = vmatpush1.bf16.msra.mxu0 0
    %316 = vmatprep.subr.bf16.mxu0 0
    %317 = vmatpush1.bf16.msra.mxu0 0
    %318 = vmatprep.subr.bf16.mxu0 0
    %319 = vmatpush1.bf16.msra.mxu0 0
    %320 = vmatprep.subr.bf16.mxu0 0
    %321 = vmatpush1.bf16.msra.mxu0 0
    %322 = vmatprep.subr.bf16.mxu0 0
    %323 = vmatpush1.bf16.msra.mxu0 0
    %324 = vmatprep.subr.bf16.mxu0 0
    %325 = vmatpush1.bf16.msra.mxu0 0
    %326 = vmatprep.subr.bf16.mxu0 0
    %327 = vmatpush1.bf16.msra.mxu0 0
    %328 = vmatprep.mubr.bf16.mxu0 0
    %329 = vmatmul.mubr.bf16.gmra.mrb[0].mxu0 %v243
    %v330 = vpop.f32.mrb[0].mxu0
    %v331 = vadd.f32 %v247, %v330
    %v332 = vpop.f32.mrb[0].mxu0
    %v333 = vpop.f32.mrb[0].mxu0
    %v334 = vpop.f32.mrb[0].mxu0
    %335 = vdwg.mxu0
    %336 = vst [vmem:[#allocation8] sm:$0xff] %v331
    // Predicated region
    $region26: #{tpu_custom_call.1} parent=1 // pred_check
      _
    $region27: #{tpu_custom_call.1} parent=1 // pred_check_branch
      %338 = sbr.rel (0) target = $region29
    $region28: #{tpu_custom_call.1} parent=1 // pred_region
      %s340 = ssub.s32 128, 128
      %341 = vsyncadd [#allocation4], %s340
      %s343 = sshll.u32 [#allocation8], 4
      %s344 = int_to_ptr.vmem [resolvable:$true] %s343
      %346 = dma.vmem_to_hbm [thread:$0]  %s344, 128, %s3, [#allocation4]
    $region29: #{tpu_custom_call.1} parent=1 // pred_fallthru
      _
    // Predicated region
    $region30: #{tpu_custom_call.1} parent=1 // pred_check
      _
    $region31: #{tpu_custom_call.1} parent=1 // pred_check_branch
      %348 = sbr.rel (0) target = $region33
    $region32: #{tpu_custom_call.1} parent=1 // pred_region
      %349 = dma.done [#allocation4], 128
    $region33: #{tpu_custom_call.1} parent=1 // pred_fallthru
      _
    %350 = vsyncpa [#allocation3], 1
    %351 = vsyncpa [#allocation6], 1
    %352 = vsyncpa [#allocation4], 1

</llo_original>
